<compile_context>
chip_gen: v7x
topology: tpu7x:2x2x1
jax: 0.10.0
libtpu: 0.0.40
codegen_flags: <defaults>
</compile_context>

<pallas_src>
import functools

import jax
import jax.numpy as jnp
from jax.experimental import pallas as pl
from jax.experimental.pallas import tpu as pltpu

_LANE = 128      # lane width of a vreg (last dim)
_SUBLANE = 8     # sublane count (second-to-last dim)


def _round_up(n, m):
    return ((n + m - 1) // m) * m


# --------------------------------------------------------------------------
# Kernels
# --------------------------------------------------------------------------

def _forward_math(x, w1, b1, w2, b2):
    """relu(x @ W1 + b1) @ W2 + b2.

    Both matmuls hit the MXU with f32 accumulation; the bias + ReLU epilogue
    stays in f32 (v5e's VPU has no bf16).  If the weights are bf16, the hidden
    activation is cast back to bf16 only for the second MXU operand.
    """
    h = jnp.dot(x, w1, preferred_element_type=jnp.float32)
    h = jnp.maximum(h + b1, 0.0)
    y = jnp.dot(h.astype(w2.dtype), w2, preferred_element_type=jnp.float32)
    return y + b2


def _dqn_kernel(x_ref, w1_ref, b1_ref, w2_ref, b2_ref, o_ref):
    """Q-values for one batch tile; lane-dense (x, 128)-wide store."""
    q = _forward_math(x_ref[...], w1_ref[...], b1_ref[...],
                      w2_ref[...], b2_ref[...])
    o_ref[...] = q.astype(o_ref.dtype)


def _dqn_argmax_kernel(out_dim, x_ref, w1_ref, b1_ref, w2_ref, b2_ref, a_ref):
    """Fused forward + greedy-action argmax: one int32 per row instead of a
    padded 128-lane f32 slab (the review's biggest output-traffic lever)."""
    q = _forward_math(x_ref[...], w1_ref[...], b1_ref[...],
                      w2_ref[...], b2_ref[...])
    lane = jax.lax.broadcasted_iota(jnp.int32, q.shape, 1)
    q = jnp.where(lane < out_dim, q, -jnp.inf)          # mask padded lanes
    qmax = jnp.max(q, axis=-1, keepdims=True)
    idx = jnp.where(q == qmax, lane, q.shape[-1])       # first max, like argmax
    a_ref[...] = jnp.min(idx, axis=-1, keepdims=True)


# --------------------------------------------------------------------------
# Parameter layout (one-time; do NOT call per forward)
# --------------------------------------------------------------------------

def prepare_dqn_params(w1, b1, w2, b2, *, compute_dtype=jnp.float32):
    """Transpose PyTorch nn.Linear weights to (in, out) and zero-pad the hidden
    and output feature dims to 128 lanes.  Padding is mathematically inert:
    padded hidden units have zero weight/bias (relu(0) = 0) and padded output
    lanes are exactly zero and ignored by consumers.

    compute_dtype=jnp.bfloat16 is recommended on v6e/v7x (halves x/weight
    traffic, native MXU bf16 rate); biases stay f32 for the f32 epilogue.
    """
    w1 = jnp.asarray(w1, jnp.float32)
    b1 = jnp.asarray(b1, jnp.float32)
    w2 = jnp.asarray(w2, jnp.float32)
    b2 = jnp.asarray(b2, jnp.float32)

    hidden, in_dim = w1.shape
    out_dim = w2.shape[0]
    h_pad = _round_up(hidden, _LANE)
    o_pad = _round_up(out_dim, _LANE)

    w1_t = jnp.zeros((in_dim, h_pad), jnp.float32).at[:, :hidden].set(w1.T)
    b1_r = jnp.zeros((1, h_pad), jnp.float32).at[:, :hidden].set(b1)
    w2_t = jnp.zeros((h_pad, o_pad), jnp.float32).at[:hidden, :out_dim].set(w2.T)
    b2_r = jnp.zeros((1, o_pad), jnp.float32).at[:, :out_dim].set(b2)

    return {
        "w1": w1_t.astype(compute_dtype), "b1": b1_r,
        "w2": w2_t.astype(compute_dtype), "b2": b2_r,
        "in_dim": in_dim, "hidden": hidden, "out_dim": out_dim,
        "h_pad": h_pad, "o_pad": o_pad,
    }


# --------------------------------------------------------------------------
# Dispatch helpers
# --------------------------------------------------------------------------

def _tile_plan(batch, block_b):
    """Batch tiling.  Large tiles amortize the ~0.35 us/step grid overhead;
    when more than one tile is needed, keep the tile count even so v7x's two
    TensorCores split the "parallel" grid axis without idling."""
    tile_b = _round_up(min(block_b, max(batch, 1)), _SUBLANE)
    num_tiles = pl.cdiv(batch, tile_b)
    if num_tiles > 1 and num_tiles % 2 == 1:
        tile_b = _round_up(pl.cdiv(batch, num_tiles + 1), _SUBLANE)
        num_tiles = pl.cdiv(batch, tile_b)
    return tile_b, num_tiles


def _call_dqn(kernel_fn, x, params, out_feat, out_dtype, block_b):
    batch, in_dim = x.shape
    assert in_dim == params["in_dim"]
    h_pad, o_pad = params["h_pad"], params["o_pad"]
    w1, b1, w2, b2 = params["w1"], params["b1"], params["w2"], params["b2"]
    x = x.astype(w1.dtype)
    args = (x, w1, b1, w2, b2)

    tile_b, num_tiles = _tile_plan(batch, block_b)
    out_shape = jax.ShapeDtypeStruct((batch, out_feat), out_dtype)

    if num_tiles == 1:
        # One tile: grid-less call, everything whole in VMEM.
        return pl.pallas_call(
            kernel_fn,
            out_shape=out_shape,
            in_specs=[pl.BlockSpec(memory_space=pltpu.MemorySpace.VMEM)] * 5,
            out_specs=pl.BlockSpec(memory_space=pltpu.MemorySpace.VMEM),
        )(*args)

    w_item = jnp.dtype(w1.dtype).itemsize
    flops = 2 * batch * (in_dim * h_pad + h_pad * o_pad)
    bytes_accessed = (batch * in_dim * w_item                       # x stream
                      + (in_dim * h_pad + h_pad * o_pad) * w_item   # weights (once)
                      + (h_pad + o_pad) * 4                         # biases
                      + batch * out_feat * jnp.dtype(out_dtype).itemsize)

    return pl.pallas_call(
        kernel_fn,
        out_shape=out_shape,
        grid=(num_tiles,),
        in_specs=[
            # Only the activation tile streams across grid steps (ragged last
            # block is handled by Pallas; its extra rows are never consumed).
            pl.BlockSpec((tile_b, in_dim), lambda i: (i, 0)),
            # Weights / biases: constant index_map -> DMA'd once, VMEM-resident.
            pl.BlockSpec((in_dim, h_pad), lambda i: (0, 0)),
            pl.BlockSpec((1, h_pad), lambda i: (0, 0)),
            pl.BlockSpec((h_pad, o_pad), lambda i: (0, 0)),
            pl.BlockSpec((1, o_pad), lambda i: (0, 0)),
        ],
        out_specs=pl.BlockSpec((tile_b, out_feat), lambda i: (i, 0)),
        compiler_params=pltpu.CompilerParams(
            dimension_semantics=("parallel",)),
        cost_estimate=pl.CostEstimate(
            flops=flops, transcendentals=0, bytes_accessed=bytes_accessed),
    )(*args)


# --------------------------------------------------------------------------
# Public wrappers
# --------------------------------------------------------------------------

def dqn_forward_batched(x, params, *, block_b=2048,
                        out_dtype=jnp.float32, slice_output=True):
    """x: (B, In) slab of states -> (B, out_dim) Q-values.

    block_b=2048 keeps per-step grid overhead negligible while the working set
    (x tile + lane-padded out tile, double-buffered, + resident weights) stays
    a few MiB -- far inside every generation's scoped-VMEM budget.
    out_dtype=jnp.bfloat16 halves the (dominant) output writeback.
    slice_output=False returns the lane-padded (B, 128) slab so a fused
    consumer can slice/reduce it lazily instead of materializing a copy.
    """
    x = jnp.asarray(x)
    out = _call_dqn(_dqn_kernel, x, params, params["o_pad"], out_dtype, block_b)
    if slice_output:
        return out[:, :params["out_dim"]]
    return out


def dqn_forward(x, params):
    """Single state, matching the PyTorch forward: (In,) -> (1, out_dim)."""
    x = jnp.asarray(x, jnp.float32)[None, :]   # unsqueeze(0)
    return dqn_forward_batched(x, params)


def dqn_select_actions(x, params, *, block_b=2048):
    """Fused forward + argmax over actions: (B, In) -> (B,) int32 greedy
    actions.  Stores 4 bytes/row instead of a 512-byte padded Q slab."""
    x = jnp.asarray(x)
    kernel = functools.partial(_dqn_argmax_kernel, params["out_dim"])
    out = _call_dqn(kernel, x, params, 1, jnp.int32, block_b)
    return out[:, 0]


def init_dqn_params(key, input_dim, hidden_neurons, output_dim):
    """Deterministic init mirroring nn.Linear's U(-1/sqrt(fan_in), +1/sqrt(fan_in))."""
    k1, k2, k3, k4 = jax.random.split(key, 4)
    lim1 = 1.0 / jnp.sqrt(jnp.float32(input_dim))
    lim2 = 1.0 / jnp.sqrt(jnp.float32(hidden_neurons))
    w1 = jax.random.uniform(k1, (hidden_neurons, input_dim), jnp.float32, -lim1, lim1)
    b1 = jax.random.uniform(k2, (hidden_neurons,), jnp.float32, -lim1, lim1)
    w2 = jax.random.uniform(k3, (output_dim, hidden_neurons), jnp.float32, -lim2, lim2)
    b2 = jax.random.uniform(k4, (output_dim,), jnp.float32, -lim2, lim2)
    return w1, b1, w2, b2


if __name__ == "__main__":
    # Shapes consistent with the module: state dim 16, hidden 32, 4 actions.
    input_dim, hidden_neurons, output_dim = 16, 32, 4

    key = jax.random.PRNGKey(0)
    kx, kb, kp = jax.random.split(key, 3)
    w1, b1, w2, b2 = init_dqn_params(kp, input_dim, hidden_neurons, output_dim)

    # One-time parameter layout prep (transpose + lane padding).
    params_f32 = prepare_dqn_params(w1, b1, w2, b2)
    params_bf16 = prepare_dqn_params(w1, b1, w2, b2, compute_dtype=jnp.bfloat16)

    def ref_fwd(xb):
        return jnp.maximum(xb @ w1.T + b1, 0.0) @ w2.T + b2

    # 1) Single-state path (exact PyTorch forward semantics, batch = 1):
    #    grid-less call, everything whole in VMEM.
    x_single = jax.random.normal(kx, (input_dim,), jnp.float32)
    out_single = jax.block_until_ready(dqn_forward(x_single, params_f32))
    ref_single = ref_fwd(x_single[None, :])
    assert out_single.shape == (1, output_dim)
    assert jnp.allclose(out_single, ref_single, atol=1e-5), "single-state mismatch"

    # 2) Batched path (replay-buffer style).  block_b=128 here only to exercise
    #    the multi-tile grid, the odd->even tile rebalance (3 -> 4 tiles) and
    #    the ragged last block; production default is block_b=2048.
    batch = 300
    x_batch = jax.random.normal(kb, (batch, input_dim), jnp.float32)
    out_batch = jax.block_until_ready(
        dqn_forward_batched(x_batch, params_f32, block_b=128))
    ref_batch = ref_fwd(x_batch)
    assert out_batch.shape == (batch, output_dim)
    assert jnp.allclose(out_batch, ref_batch, atol=1e-4), "batched mismatch"

    # 3) bf16 operand / output variant (v6e/v7x traffic optimization),
    #    grid-less path at the default block_b.
    out_bf16 = jax.block_until_ready(
        dqn_forward_batched(x_batch, params_bf16, out_dtype=jnp.bfloat16))
    assert jnp.allclose(out_bf16.astype(jnp.float32), ref_batch,
                        atol=5e-2, rtol=5e-2), "bf16 batched mismatch"

    # 4) Fused forward + greedy-action argmax (multi-tile grid path).
    acts = jax.block_until_ready(
        dqn_select_actions(x_batch, params_f32, block_b=128))
    ref_acts = jnp.argmax(ref_batch, axis=-1).astype(jnp.int32)
    assert acts.shape == (batch,)
    assert jnp.array_equal(acts, ref_acts), "fused argmax mismatch"

    print("KERNEL_OK")
</pallas_src>

<mosaic_0001>
module attributes {stable_mosaic.version = 11 : i64} {
  func.func @_dqn_kernel(%arg0: memref<1x16xf32, #tpu.memory_space<vmem>>, %arg1: memref<16x128xf32, #tpu.memory_space<vmem>>, %arg2: memref<1x128xf32, #tpu.memory_space<vmem>>, %arg3: memref<128x128xf32, #tpu.memory_space<vmem>>, %arg4: memref<1x128xf32, #tpu.memory_space<vmem>>, %arg5: memref<1x128xf32, #tpu.memory_space<vmem>>) attributes {dimension_semantics = [], scalar_prefetch = 0 : i64, scratch_operands = 0 : i64, tpu.core_type = #tpu.core_type<tc>} {
    %c0 = arith.constant 0 : index
    %c0_0 = arith.constant 0 : index
    %0 = vector.load %arg0[%c0, %c0_0] : memref<1x16xf32, #tpu.memory_space<vmem>>, vector<1x16xf32>
    %c0_1 = arith.constant 0 : index
    %c0_2 = arith.constant 0 : index
    %1 = vector.load %arg1[%c0_1, %c0_2] : memref<16x128xf32, #tpu.memory_space<vmem>>, vector<16x128xf32>
    %c0_3 = arith.constant 0 : index
    %c0_4 = arith.constant 0 : index
    %2 = vector.load %arg2[%c0_3, %c0_4] : memref<1x128xf32, #tpu.memory_space<vmem>>, vector<1x128xf32>
    %c0_5 = arith.constant 0 : index
    %c0_6 = arith.constant 0 : index
    %3 = vector.load %arg3[%c0_5, %c0_6] : memref<128x128xf32, #tpu.memory_space<vmem>>, vector<128x128xf32>
    %c0_7 = arith.constant 0 : index
    %c0_8 = arith.constant 0 : index
    %4 = vector.load %arg4[%c0_7, %c0_8] : memref<1x128xf32, #tpu.memory_space<vmem>>, vector<1x128xf32>
    %cst = arith.constant dense<0.000000e+00> : vector<1x128xf32>
    %5 = tpu.matmul %0, %1, %cst {dimension_numbers = #tpu.dot_dimension_numbers<[1], [0], [0], [1], [0, 0, 1, 1], [], []>} : vector<1x16xf32>, vector<16x128xf32>, vector<1x128xf32> -> vector<1x128xf32>
    %6 = arith.addf %5, %2 : vector<1x128xf32>
    %cst_9 = arith.constant 0.000000e+00 : f32
    %7 = vector.broadcast %cst_9 : f32 to vector<1x128xf32>
    %8 = arith.maximumf %6, %7 : vector<1x128xf32>
    %cst_10 = arith.constant dense<0.000000e+00> : vector<1x128xf32>
    %9 = tpu.matmul %8, %3, %cst_10 {dimension_numbers = #tpu.dot_dimension_numbers<[1], [0], [0], [1], [0, 0, 1, 1], [], []>} : vector<1x128xf32>, vector<128x128xf32>, vector<1x128xf32> -> vector<1x128xf32>
    %10 = arith.addf %9, %4 : vector<1x128xf32>
    %c0_11 = arith.constant 0 : index
    %c0_12 = arith.constant 0 : index
    %11 = vector.load %arg5[%c0_11, %c0_12] : memref<1x128xf32, #tpu.memory_space<vmem>>, vector<1x128xf32>
    tpu.vector_store %arg5[%c0_11, %c0_12], %10 {strides = array<i32>} : memref<1x128xf32, #tpu.memory_space<vmem>>, vector<1x128xf32>,
    return
  }
}

</mosaic_0001>

<llo_original>
// kernel: tpu_custom_call.1
$region0: #{tpu_custom_call.1}
  #allocation0 [shape = 'u32[]', space=smem, size = 0x4, offset = 0x4, fixed_abs, tag = 'smem constant byte address 0x4 - core index']
  #allocation1 [shape = 'u32[144,128]{1,0:T(1,128)}', space=vmem, size = 0x12000, scoped, tag = 'internal scratch']
  %s0 = inlined_call_operand.hbm [shape: f32[1,16], index: 0, kind: input, shape index: {}]
  %s1 = inlined_call_operand.hbm [shape: f32[16,128], index: 1, kind: input, shape index: {}]
  %s2 = inlined_call_operand.vmem [shape: f32[1,128], index: 2, kind: input, shape index: {}]
  %s3 = inlined_call_operand.hbm [shape: f32[128,128], index: 3, kind: input, shape index: {}]
  %s4 = inlined_call_operand.vmem [shape: f32[1,128], index: 4, kind: input, shape index: {}]
  %s5 = inlined_call_operand.hbm [shape: f32[1,128], index: 5, kind: output, shape index: {}]
  %s6 = sld [smem:[#allocation0]]
  $region42: #{tpu_custom_call.1} parent=0
    _
  %s8 = ssub.s32 1, %s6
  %s9 = scalar_select 0, %s8, %s6
  $region1: #{tpu_custom_call.1} parent=0
    #allocation2 [shape = 'u8[512]{0}', space=vmem, size = 0x400, scoped, tag = 'input window, operand 0, single buffered']
    #allocation3 [shape = 's32[1]{0}', space=sflag, size = 0x4, scoped, tag = 'scoped memory for tpu_custom_call.1']
    #allocation4 [shape = 's32[1]{0}', space=sflag, size = 0x4, scoped, tag = 'scoped memory for tpu_custom_call.1']
    #allocation5 [shape = 'u8[8192]{0}', space=vmem, size = 0x2000, scoped, tag = 'input window, operand 1, single buffered']
    #allocation6 [shape = 's32[1]{0}', space=sflag, size = 0x4, scoped, tag = 'scoped memory for tpu_custom_call.1']
    #allocation7 [shape = 'u8[65536]{0}', space=vmem, size = 0x10000, scoped, tag = 'input window, operand 3, single buffered']
    #allocation8 [shape = 'u8[512]{0}', space=vmem, size = 0x400, scoped, tag = 'output window, operand 0, single buffered']
    %10 = vsyncpa [#allocation3], 0
    %11 = vsyncpa [#allocation6], 0
    %12 = vsyncpa [#allocation4], 0
    // Predicated region
    $region2: #{tpu_custom_call.1} parent=1 // pred_check
      _
    $region3: #{tpu_custom_call.1} parent=1 // pred_check_branch
      %14 = sbr.rel (0) target = $region5
    $region4: #{tpu_custom_call.1} parent=1 // pred_region
      %s16 = ssub.s32 16, 16
      %17 = vsyncadd [#allocation3], %s16
      %s19 = sshll.u32 [#allocation2], 4
      %s20 = int_to_ptr.vmem [resolvable:$true] %s19
      %22 = dma.hbm_to_vmem [thread:$0]  %s0, 16, %s20, [#allocation3]
    $region5: #{tpu_custom_call.1} parent=1 // pred_fallthru
      _
    // Predicated region
    $region6: #{tpu_custom_call.1} parent=1 // pred_check
      _
    $region7: #{tpu_custom_call.1} parent=1 // pred_check_branch
      %24 = sbr.rel (0) target = $region9
    $region8: #{tpu_custom_call.1} parent=1 // pred_region
      %s26 = ssub.s32 256, 256
      %27 = vsyncadd [#allocation6], %s26
      %s28 = sshll.u32 [#allocation5], 4
      %s29 = int_to_ptr.vmem [resolvable:$true] %s28
      %34 = dma.hbm_to_vmem [thread:$0]  %s1, 256, %s29, [#allocation6], 128, 128, 8
    $region9: #{tpu_custom_call.1} parent=1 // pred_fallthru
      _
    // Predicated region
    $region10: #{tpu_custom_call.1} parent=1 // pred_check
      _
    $region11: #{tpu_custom_call.1} parent=1 // pred_check_branch
      %36 = sbr.rel (0) target = $region13
    $region12: #{tpu_custom_call.1} parent=1 // pred_region
      _
    $region13: #{tpu_custom_call.1} parent=1 // pred_fallthru
      _
    // Predicated region
    $region14: #{tpu_custom_call.1} parent=1 // pred_check
      _
    $region15: #{tpu_custom_call.1} parent=1 // pred_check_branch
      %38 = sbr.rel (0) target = $region17
    $region16: #{tpu_custom_call.1} parent=1 // pred_region
      %s40 = ssub.s32 2048, 2048
      %41 = vsyncadd [#allocation6], %s40
      %s42 = sshll.u32 [#allocation7], 4
      %s43 = int_to_ptr.vmem [resolvable:$true] %s42
      %48 = dma.hbm_to_vmem [thread:$0]  %s3, 2048, %s43, [#allocation6], 128, 128, 8
    $region17: #{tpu_custom_call.1} parent=1 // pred_fallthru
      _
    // Predicated region
    $region18: #{tpu_custom_call.1} parent=1 // pred_check
      _
    $region19: #{tpu_custom_call.1} parent=1 // pred_check_branch
      %50 = sbr.rel (0) target = $region21
    $region20: #{tpu_custom_call.1} parent=1 // pred_region
      _
    $region21: #{tpu_custom_call.1} parent=1 // pred_fallthru
      _
    // Predicated region
    $region22: #{tpu_custom_call.1} parent=1 // pred_check
      _
    $region23: #{tpu_custom_call.1} parent=1 // pred_check_branch
      %52 = sbr.rel (0) target = $region25
    $region24: #{tpu_custom_call.1} parent=1 // pred_region
      %53 = dma.done [#allocation3], 16
    $region25: #{tpu_custom_call.1} parent=1 // pred_fallthru
      _
    // Predicated region
    $region26: #{tpu_custom_call.1} parent=1 // pred_check
      _
    $region27: #{tpu_custom_call.1} parent=1 // pred_check_branch
      %55 = sbr.rel (0) target = $region29
    $region28: #{tpu_custom_call.1} parent=1 // pred_region
      %56 = dma.done [#allocation6], 256
    $region29: #{tpu_custom_call.1} parent=1 // pred_fallthru
      _
    // Predicated region
    $region30: #{tpu_custom_call.1} parent=1 // pred_check
      _
    $region31: #{tpu_custom_call.1} parent=1 // pred_check_branch
      %58 = sbr.rel (0) target = $region33
    $region32: #{tpu_custom_call.1} parent=1 // pred_region
      %59 = dma.done [#allocation6], 2048
    $region33: #{tpu_custom_call.1} parent=1 // pred_fallthru
      _
    %v60 = vld [vmem:[#allocation2] sm:$0x1]
    %v61 = vld [vmem:[#allocation5] sm:$0xff]
    %v62 = vld [vmem:[#allocation5 + $0x8] sm:$0xff]
    %v63 = vld [vmem:[%s2] sm:$0x1]
    %v64 = vld [vmem:[#allocation7] sm:$0xff]
    %v65 = vld [vmem:[#allocation7 + $0x8] sm:$0xff]
    %v66 = vld [vmem:[#allocation7 + $0x10] sm:$0xff]
    %v67 = vld [vmem:[#allocation7 + $0x18] sm:$0xff]
    %v68 = vld [vmem:[#allocation7 + $0x20] sm:$0xff]
    %v69 = vld [vmem:[#allocation7 + $0x28] sm:$0xff]
    %v70 = vld [vmem:[#allocation7 + $0x30] sm:$0xff]
    %v71 = vld [vmem:[#allocation7 + $0x38] sm:$0xff]
    %v72 = vld [vmem:[#allocation7 + $0x40] sm:$0xff]
    %v73 = vld [vmem:[#allocation7 + $0x48] sm:$0xff]
    %v74 = vld [vmem:[#allocation7 + $0x50] sm:$0xff]
    %v75 = vld [vmem:[#allocation7 + $0x58] sm:$0xff]
    %v76 = vld [vmem:[#allocation7 + $0x60] sm:$0xff]
    %v77 = vld [vmem:[#allocation7 + $0x68] sm:$0xff]
    %v78 = vld [vmem:[#allocation7 + $0x70] sm:$0xff]
    %v79 = vld [vmem:[#allocation7 + $0x78] sm:$0xff]
    %v80 = vld [vmem:[%s4] sm:$0x1]
    %vm81 = vcmask 130048
    %v83 = vsel %vm81, %v60, 0
    %85 = vmatprep.subr.mxu0 0.0
    %86 = vmatpush1.msra.mxu0 %v61
    %87 = vmatprep.subr.mxu0 0.0
    %88 = vmatpush1.msra.mxu0 %v62
    %89 = vmatprep.subr.mxu0 0.0
    %90 = vmatpush1.msra.mxu0 0.0
    %91 = vmatprep.subr.mxu0 0.0
    %92 = vmatpush1.msra.mxu0 0.0
    %93 = vmatprep.subr.mxu0 0.0
    %94 = vmatpush1.msra.mxu0 0.0
    %95 = vmatprep.subr.mxu0 0.0
    %96 = vmatpush1.msra.mxu0 0.0
    %97 = vmatprep.subr.mxu0 0.0
    %98 = vmatpush1.msra.mxu0 0.0
    %99 = vmatprep.subr.mxu0 0.0
    %100 = vmatpush1.msra.mxu0 0.0
    %101 = vmatprep.subr.mxu0 0.0
    %102 = vmatpush1.msra.mxu0 0.0
    %103 = vmatprep.subr.mxu0 0.0
    %104 = vmatpush1.msra.mxu0 0.0
    %105 = vmatprep.subr.mxu0 0.0
    %106 = vmatpush1.msra.mxu0 0.0
    %107 = vmatprep.subr.mxu0 0.0
    %108 = vmatpush1.msra.mxu0 0.0
    %109 = vmatprep.subr.mxu0 0.0
    %110 = vmatpush1.msra.mxu0 0.0
    %111 = vmatprep.subr.mxu0 0.0
    %112 = vmatpush1.msra.mxu0 0.0
    %113 = vmatprep.subr.mxu0 0.0
    %114 = vmatpush1.msra.mxu0 0.0
    %115 = vmatprep.subr.mxu0 0.0
    %116 = vmatpush1.msra.mxu0 0.0
    %117 = vmatprep.subr.mxu0 0.0
    %118 = vmatpush1.msra.mxu0 0.0
    %119 = vmatprep.subr.mxu0 0.0
    %120 = vmatpush1.msra.mxu0 0.0
    %121 = vmatprep.subr.mxu0 0.0
    %122 = vmatpush1.msra.mxu0 0.0
    %123 = vmatprep.subr.mxu0 0.0
    %124 = vmatpush1.msra.mxu0 0.0
    %125 = vmatprep.subr.mxu0 0.0
    %126 = vmatpush1.msra.mxu0 0.0
    %127 = vmatprep.subr.mxu0 0.0
    %128 = vmatpush1.msra.mxu0 0.0
    %129 = vmatprep.subr.mxu0 0.0
    %130 = vmatpush1.msra.mxu0 0.0
    %131 = vmatprep.subr.mxu0 0.0
    %132 = vmatpush1.msra.mxu0 0.0
    %133 = vmatprep.subr.mxu0 0.0
    %134 = vmatpush1.msra.mxu0 0.0
    %135 = vmatprep.subr.mxu0 0.0
    %136 = vmatpush1.msra.mxu0 0.0
    %137 = vmatprep.subr.mxu0 0.0
    %138 = vmatpush1.msra.mxu0 0.0
    %139 = vmatprep.subr.mxu0 0.0
    %140 = vmatpush1.msra.mxu0 0.0
    %141 = vmatprep.subr.mxu0 0.0
    %142 = vmatpush1.msra.mxu0 0.0
    %143 = vmatprep.subr.mxu0 0.0
    %144 = vmatpush1.msra.mxu0 0.0
    %145 = vmatprep.subr.mxu0 0.0
    %146 = vmatpush1.msra.mxu0 0.0
    %147 = vmatprep.subr.mxu0 0.0
    %148 = vmatpush1.msra.mxu0 0.0
    %149 = vmatprep.mubr.f32.mxu0 0.0
    %150 = vmatmul.mubr.f32.gmra.mrb[0].mxu0 %v83
    %v151 = vpop.f32.mrb[0].mxu0
    %v152 = vadd.f32 %v63, %v151
    %v153 = vpop.f32.mrb[0].mxu0
    %154 = vdwg.mxu0
    %v155 = vmax.f32 %v152, 0.0
    %156 = vmatprep.subr.mxu0 0.0
    %157 = vmatpush1.msra.mxu0 %v64
    %158 = vmatprep.subr.mxu0 0.0
    %159 = vmatpush1.msra.mxu0 %v65
    %160 = vmatprep.subr.mxu0 0.0
    %161 = vmatpush1.msra.mxu0 %v66
    %162 = vmatprep.subr.mxu0 0.0
    %163 = vmatpush1.msra.mxu0 %v67
    %164 = vmatprep.subr.mxu0 0.0
    %165 = vmatpush1.msra.mxu0 %v68
    %166 = vmatprep.subr.mxu0 0.0
    %167 = vmatpush1.msra.mxu0 %v69
    %168 = vmatprep.subr.mxu0 0.0
    %169 = vmatpush1.msra.mxu0 %v70
    %170 = vmatprep.subr.mxu0 0.0
    %171 = vmatpush1.msra.mxu0 %v71
    %172 = vmatprep.subr.mxu0 0.0
    %173 = vmatpush1.msra.mxu0 %v72
    %174 = vmatprep.subr.mxu0 0.0
    %175 = vmatpush1.msra.mxu0 %v73
    %176 = vmatprep.subr.mxu0 0.0
    %177 = vmatpush1.msra.mxu0 %v74
    %178 = vmatprep.subr.mxu0 0.0
    %179 = vmatpush1.msra.mxu0 %v75
    %180 = vmatprep.subr.mxu0 0.0
    %181 = vmatpush1.msra.mxu0 %v76
    %182 = vmatprep.subr.mxu0 0.0
    %183 = vmatpush1.msra.mxu0 %v77
    %184 = vmatprep.subr.mxu0 0.0
    %185 = vmatpush1.msra.mxu0 %v78
    %186 = vmatprep.subr.mxu0 0.0
    %187 = vmatpush1.msra.mxu0 %v79
    %188 = vmatprep.subr.mxu0 0.0
    %189 = vmatpush1.msra.mxu0 0.0
    %190 = vmatprep.subr.mxu0 0.0
    %191 = vmatpush1.msra.mxu0 0.0
    %192 = vmatprep.subr.mxu0 0.0
    %193 = vmatpush1.msra.mxu0 0.0
    %194 = vmatprep.subr.mxu0 0.0
    %195 = vmatpush1.msra.mxu0 0.0
    %196 = vmatprep.subr.mxu0 0.0
    %197 = vmatpush1.msra.mxu0 0.0
    %198 = vmatprep.subr.mxu0 0.0
    %199 = vmatpush1.msra.mxu0 0.0
    %200 = vmatprep.subr.mxu0 0.0
    %201 = vmatpush1.msra.mxu0 0.0
    %202 = vmatprep.subr.mxu0 0.0
    %203 = vmatpush1.msra.mxu0 0.0
    %204 = vmatprep.subr.mxu0 0.0
    %205 = vmatpush1.msra.mxu0 0.0
    %206 = vmatprep.subr.mxu0 0.0
    %207 = vmatpush1.msra.mxu0 0.0
    %208 = vmatprep.subr.mxu0 0.0
    %209 = vmatpush1.msra.mxu0 0.0
    %210 = vmatprep.subr.mxu0 0.0
    %211 = vmatpush1.msra.mxu0 0.0
    %212 = vmatprep.subr.mxu0 0.0
    %213 = vmatpush1.msra.mxu0 0.0
    %214 = vmatprep.subr.mxu0 0.0
    %215 = vmatpush1.msra.mxu0 0.0
    %216 = vmatprep.subr.mxu0 0.0
    %217 = vmatpush1.msra.mxu0 0.0
    %218 = vmatprep.subr.mxu0 0.0
    %219 = vmatpush1.msra.mxu0 0.0
    %220 = vmatprep.mubr.f32.mxu0 0.0
    %221 = vmatmul.mubr.f32.gmra.mrb[0].mxu0 %v155
    %v222 = vpop.f32.mrb[0].mxu0
    %v223 = vadd.f32 %v80, %v222
    %v224 = vpop.f32.mrb[0].mxu0
    %225 = vdwg.mxu0
    %226 = vst [vmem:[#allocation8] sm:$0x1] %v223
    // Predicated region
    $region34: #{tpu_custom_call.1} parent=1 // pred_check
      _
    $region35: #{tpu_custom_call.1} parent=1 // pred_check_branch
      %228 = sbr.rel (0) target = $region37
    $region36: #{tpu_custom_call.1} parent=1 // pred_region
      %s230 = ssub.s32 16, 16
      %231 = vsyncadd [#allocation4], %s230
      %s233 = sshll.u32 [#allocation8], 4
      %s234 = int_to_ptr.vmem [resolvable:$true] %s233
      %236 = dma.vmem_to_hbm [thread:$0]  %s234, 16, %s5, [#allocation4]
    $region37: #{tpu_custom_call.1} parent=1 // pred_fallthru
      _
    // Predicated region
    $region38: #{tpu_custom_call.1} parent=1 // pred_check
      _
    $region39: #{tpu_custom_call.1} parent=1 // pred_check_branch
      %238 = sbr.rel (0) target = $region41
    $region40: #{tpu_custom_call.1} parent=1 // pred_region
      %239 = dma.done [#allocation4], 16
    $region41: #{tpu_custom_call.1} parent=1 // pred_fallthru
      _
    %240 = vsyncpa [#allocation3], 1
    %241 = vsyncpa [#allocation6], 1
    %242 = vsyncpa [#allocation4], 1

</llo_original>
